<compile_context>
chip_gen: v7x
topology: tpu7x:2x2x1
jax: 0.10.0
libtpu: 0.0.40
codegen_flags: <defaults>
</compile_context>

<pallas_src>
import math
import functools

import jax
import jax.numpy as jnp
from jax.experimental import pallas as pl
from jax.experimental.pallas import tpu as pltpu


def _round_up(x, m):
    return ((x + m - 1) // m) * m


def _decoder_kernel(x_ref, w_ref, b_ref, o_ref):
    # Fused: linear (single MXU pass, f32 accumulate) -> bias -> (eval) dropout -> sigmoid.
    acc = jnp.dot(x_ref[...], w_ref[...], preferred_element_type=jnp.float32)
    acc = acc + b_ref[...].astype(jnp.float32)
    # dropout(p=0.5) is the identity in eval mode.
    # TODO(synk): training-mode stochastic dropout (mask + 1/(1-p) scale) not implemented.
    o_ref[...] = jax.nn.sigmoid(acc).astype(o_ref.dtype)


def prepare_decoder_params(weight, bias, *, dtype=None):
    """One-time parameter preprocessing (call once, NOT per forward).

    weight: (Dout, Din) as nn.Linear(Din, Dout).weight
    bias:   (Dout,)
    Returns:
      w_t: (Din, Dout) pre-transposed (no lane padding — Dout as a full-array
           last dim is legal in the BlockSpec and avoids padded HBM writeback)
      b2 : (1, Dout)
    Optionally cast params to bf16 via dtype= (cast activations too) to halve
    the HBM streams; accumulation stays f32 in the kernel.
    """
    if dtype is not None:
        weight = weight.astype(dtype)
        bias = bias.astype(dtype)
    return weight.T, bias.reshape(1, -1)


@functools.partial(jax.jit, static_argnames=("block_m",))
def direct_position_embedding_decoder(g_spa_embeds, w_t, b2, *, block_m=2048):
    """Forward pass: sigmoid(dropout(Linear(g_spa_embeds))), eval-mode dropout.

    g_spa_embeds: (B, Din)
    w_t:          (Din, Dout) from prepare_decoder_params
    b2:           (1, Dout)   from prepare_decoder_params
    Returns (B, Dout).
    """
    B, din = g_spa_embeds.shape
    din_w, dout = w_t.shape
    assert din_w == din
    assert b2.shape == (1, dout)

    # Row tile: as large as block_m (amortizes per-step pipeline overhead; a
    # 2k-row f32 tile is ~0.5 MiB per buffer — trivially fits double-buffered
    # in every generation's VMEM), but capped so grid_m >= 2 and both v7x
    # TensorCores get work.  Always a multiple of 8 for sublane alignment.
    bm = max(8, min(block_m, _round_up(pl.cdiv(B, 2), 8)))
    grid_m = pl.cdiv(B, bm)  # ragged last tile is masked by Pallas; no jnp.pad

    out = pl.pallas_call(
        _decoder_kernel,
        out_shape=jax.ShapeDtypeStruct((B, dout), g_spa_embeds.dtype),
        grid_spec=pltpu.PrefetchScalarGridSpec(
            num_scalar_prefetch=0,
            grid=(grid_m,),
            in_specs=[
                pl.BlockSpec((bm, din), lambda i: (i, 0)),    # activations: tiled over batch
                pl.BlockSpec((din, dout), lambda i: (0, 0)),  # weight: block-resident
                pl.BlockSpec((1, dout), lambda i: (0, 0)),    # bias: block-resident
            ],
            out_specs=pl.BlockSpec((bm, dout), lambda i: (i, 0)),
        ),
        compiler_params=pltpu.CompilerParams(
            # Row tiles are independent -> shard across TensorCores (v7x megacore).
            dimension_semantics=("parallel",),
        ),
    )(g_spa_embeds, w_t, b2)

    return out


def _reference(x, weight, bias):
    return jax.nn.sigmoid(x @ weight.T + bias)


if __name__ == "__main__":
    B = 16                    # batch_size
    g_spa_embed_dim = 64      # Din
    feature_embed_dim = 32    # Dout

    key = jax.random.PRNGKey(0)
    k_x, k_w, k_b = jax.random.split(key, 3)

    x = jax.random.normal(k_x, (B, g_spa_embed_dim), dtype=jnp.float32)

    # Deterministic nn.Linear(Din, Dout)-style init: U(-1/sqrt(fan_in), 1/sqrt(fan_in)).
    fan_in = g_spa_embed_dim
    bound = 1.0 / math.sqrt(fan_in)
    weight = jax.random.uniform(
        k_w, (feature_embed_dim, g_spa_embed_dim), jnp.float32, -bound, bound)
    bias = jax.random.uniform(k_b, (feature_embed_dim,), jnp.float32, -bound, bound)

    # One-time parameter preprocessing, outside the per-call hot path.
    w_t, b2 = prepare_decoder_params(weight, bias)

    out = direct_position_embedding_decoder(x, w_t, b2)
    out = jax.block_until_ready(out)

    ref = _reference(x, weight, bias)
    assert out.shape == (B, feature_embed_dim)
    assert jnp.allclose(out, ref, atol=1e-5, rtol=1e-5)

    print("KERNEL_OK")
</pallas_src>

<mosaic_0001>
module attributes {stable_mosaic.version = 11 : i64} {
  func.func @_decoder_kernel(%arg0: i32, %arg1: memref<8x64xf32, #tpu.memory_space<vmem>>, %arg2: memref<64x32xf32, #tpu.memory_space<vmem>>, %arg3: memref<1x32xf32, #tpu.memory_space<vmem>>, %arg4: memref<8x32xf32, #tpu.memory_space<vmem>>) attributes {dimension_semantics = [#tpu.dimension_semantics<parallel>], iteration_bounds = array<i64: 2>, scalar_prefetch = 0 : i64, scratch_operands = 0 : i64, tpu.core_type = #tpu.core_type<tc>, window_params = [{transform_indices = @transform_0, window_bounds = array<i64: 8, 64>}, {pipeline_mode = #tpu.pipeline_mode<synchronous>, transform_indices = @transform_1, window_bounds = array<i64: 64, 32>}, {pipeline_mode = #tpu.pipeline_mode<synchronous>, transform_indices = @transform_2, window_bounds = array<i64: 1, 32>}, {transform_indices = @transform_3, window_bounds = array<i64: 8, 32>}]} {
    %c0 = arith.constant 0 : index
    %c0_0 = arith.constant 0 : index
    %0 = vector.load %arg1[%c0, %c0_0] : memref<8x64xf32, #tpu.memory_space<vmem>>, vector<8x64xf32>
    %c0_1 = arith.constant 0 : index
    %c0_2 = arith.constant 0 : index
    %1 = vector.load %arg2[%c0_1, %c0_2] : memref<64x32xf32, #tpu.memory_space<vmem>>, vector<64x32xf32>
    %cst = arith.constant dense<0.000000e+00> : vector<8x32xf32>
    %2 = tpu.matmul %0, %1, %cst {dimension_numbers = #tpu.dot_dimension_numbers<[1], [0], [0], [1], [0, 0, 1, 1], [], []>} : vector<8x64xf32>, vector<64x32xf32>, vector<8x32xf32> -> vector<8x32xf32>
    %c0_3 = arith.constant 0 : index
    %c0_4 = arith.constant 0 : index
    %3 = vector.load %arg3[%c0_3, %c0_4] : memref<1x32xf32, #tpu.memory_space<vmem>>, vector<1x32xf32>
    %4 = vector.broadcast %3 : vector<1x32xf32> to vector<8x32xf32>
    %5 = arith.addf %2, %4 : vector<8x32xf32>
    %6 = arith.negf %5 : vector<8x32xf32>
    %7 = math.exp %6 : vector<8x32xf32>
    %cst_5 = arith.constant 1.000000e+00 : f32
    %8 = vector.broadcast %cst_5 : f32 to vector<8x32xf32>
    %9 = arith.addf %8, %7 : vector<8x32xf32>
    %10 = arith.divf %8, %9 : vector<8x32xf32>
    %c0_6 = arith.constant 0 : index
    %c0_7 = arith.constant 0 : index
    %11 = vector.load %arg4[%c0_6, %c0_7] : memref<8x32xf32, #tpu.memory_space<vmem>>, vector<8x32xf32>
    tpu.vector_store %arg4[%c0_6, %c0_7], %10 {strides = array<i32>} : memref<8x32xf32, #tpu.memory_space<vmem>>, vector<8x32xf32>,
    return
  }
  func.func @transform_0(%arg0: i32) -> (i32, i32) {
    %c0_i32 = arith.constant 0 : i32
    %c0_i32_0 = arith.constant 0 : i32
    return %arg0, %c0_i32 : i32, i32
  }
  func.func @transform_1(%arg0: i32) -> (i32, i32) {
    %c0_i32 = arith.constant 0 : i32
    %c0_i32_0 = arith.constant 0 : i32
    %c0_i32_1 = arith.constant 0 : i32
    return %c0_i32, %c0_i32_0 : i32, i32
  }
  func.func @transform_2(%arg0: i32) -> (i32, i32) {
    %c0_i32 = arith.constant 0 : i32
    %c0_i32_0 = arith.constant 0 : i32
    %c0_i32_1 = arith.constant 0 : i32
    return %c0_i32, %c0_i32_0 : i32, i32
  }
  func.func @transform_3(%arg0: i32) -> (i32, i32) {
    %c0_i32 = arith.constant 0 : i32
    %c0_i32_0 = arith.constant 0 : i32
    return %arg0, %c0_i32 : i32, i32
  }
}

</mosaic_0001>

<llo_original>
// kernel: direct_position_embedding_decoder.1
$region0: #{direct_position_embedding_decoder.1}
  #allocation0 [shape = 'u32[]', space=smem, size = 0x4, offset = 0x4, fixed_abs, tag = 'smem constant byte address 0x4 - core index']
  #allocation1 [shape = 'u32[144,128]{1,0:T(1,128)}', space=vmem, size = 0x12000, scoped, tag = 'internal scratch']
  %s0 = inlined_call_operand.vmem [shape: f32[16,64], index: 0, kind: input, shape index: {}]
  %s1 = inlined_call_operand.vmem [shape: f32[64,32], index: 1, kind: input, shape index: {}]
  %s2 = inlined_call_operand.vmem [shape: f32[1,32], index: 2, kind: input, shape index: {}]
  %s3 = inlined_call_operand.hbm [shape: f32[16,32], index: 3, kind: output, shape index: {}]
  %s4 = sld [smem:[#allocation0]]
  $region45: #{direct_position_embedding_decoder.1} parent=0
    _
  %s6 = ssub.s32 1, %s4
  %s7 = scalar_select 0, %s6, %s4
  $region1: #{direct_position_embedding_decoder.1} parent=0
    #allocation2 [shape = 'u8[8192]{0}', space=vmem, size = 0x2000, scoped, tag = 'output window, operand 0']
    #allocation3 [shape = 's32[2]{0}', space=sflag, size = 0x8, scoped, tag = 'scoped memory for direct_position_embedding_decoder.1']
    %8 = vsyncpa [#allocation3], 0
    %s9 = scalar_lea.sflag [#allocation3], 1
    %10 = vsyncpa %s9, 0
    loop: start=0, step=1, limit=4
    $region2: #{direct_position_embedding_decoder.1} parent=1 // loop_pre_header
      _
    $region3: #{direct_position_embedding_decoder.1} parent=1 // loop_header
      %s12 = sphi 0, %s16
      %p13 = scmp.ge.s32.totalorder %s12, 4
      %s22 = sphi 0, %s24
      %s25 = sphi 0, %s22
      %s26 = sphi 0, %s25
      %s42 = sphi 0, %s26
      %s46 = sphi 0, %s46
      %s48 = sphi 0, %s46
      %s49 = sphi 0, %s48
      %s63 = sphi 0, %s49
      %s67 = sphi 0, %s67
      %s69 = sphi 0, %s67
      %s70 = sphi 0, %s69
      %s84 = sphi 0, %s70
      %s90 = sphi 0, %s92
      %s93 = sphi 0, %s90
      %s94 = sphi 0, %s93
      %s110 = sphi 0, %s94
    $region4: #{direct_position_embedding_decoder.1} parent=1 // loop_header_branch
      %15 = sbr.rel (%p13) target = $region8
    $region5: #{direct_position_embedding_decoder.1} parent=1 // loop_body
      %s17 = ssub.s32 %s12, 1
      %s18 = ssub.s32 %s12, 2
      %s19 = sadd.s32 %s12, 1
      %s20 = ssub.s32 %s12, %s19
      %p21 = scmp.eq.s32.totalorder %s20, 0
      %s23 = sadd.s32 %s22, 1
      %s24 = scalar_select %p21, %s22, %s23
      %p27 = pneg %p21
      %p28 = scmp.eq.s32.totalorder %s12, 1
      %p29 = por %p27, %p28
      %p30 = scmp.ne.s32.totalorder %s22, %s25
      %p31 = scmp.eq.s32.totalorder %s12, 0
      %p32 = por %p30, %p31
      %p33 = scmp.ne.s32.totalorder %s22, %s25
      %p34 = scmp.eq.s32.totalorder %s17, 1
      %p35 = por %p33, %p34
      %p36 = scmp.ne.s32.totalorder %s25, %s26
      %p37 = scmp.eq.s32.totalorder %s17, 0
      %p38 = por %p36, %p37
      %p39 = scmp.ne.s32.totalorder %s25, %s26
      %p40 = scmp.eq.s32.totalorder %s18, 1
      %p41 = por %p39, %p40
      %p43 = scmp.ne.s32.totalorder %s26, %s42
      %p44 = scmp.eq.s32.totalorder %s18, 0
      %p45 = por %p43, %p44
      %s47 = sadd.s32 %s46, 1
      %p50 = scmp.eq.s32.totalorder %s12, 1
      %p51 = scmp.ne.s32.totalorder %s46, %s48
      %p52 = scmp.eq.s32.totalorder %s12, 0
      %p53 = por %p51, %p52
      %p54 = scmp.ne.s32.totalorder %s46, %s48
      %p55 = scmp.eq.s32.totalorder %s17, 1
      %p56 = por %p54, %p55
      %p57 = scmp.ne.s32.totalorder %s48, %s49
      %p58 = scmp.eq.s32.totalorder %s17, 0
      %p59 = por %p57, %p58
      %p60 = scmp.ne.s32.totalorder %s48, %s49
      %p61 = scmp.eq.s32.totalorder %s18, 1
      %p62 = por %p60, %p61
      %p64 = scmp.ne.s32.totalorder %s49, %s63
      %p65 = scmp.eq.s32.totalorder %s18, 0
      %p66 = por %p64, %p65
      %s68 = sadd.s32 %s67, 1
      %p71 = scmp.eq.s32.totalorder %s12, 1
      %p72 = scmp.ne.s32.totalorder %s67, %s69
      %p73 = scmp.eq.s32.totalorder %s12, 0
      %p74 = por %p72, %p73
      %p75 = scmp.ne.s32.totalorder %s67, %s69
      %p76 = scmp.eq.s32.totalorder %s17, 1
      %p77 = por %p75, %p76
      %p78 = scmp.ne.s32.totalorder %s69, %s70
      %p79 = scmp.eq.s32.totalorder %s17, 0
      %p80 = por %p78, %p79
      %p81 = scmp.ne.s32.totalorder %s69, %s70
      %p82 = scmp.eq.s32.totalorder %s18, 1
      %p83 = por %p81, %p82
      %p85 = scmp.ne.s32.totalorder %s70, %s84
      %p86 = scmp.eq.s32.totalorder %s18, 0
      %p87 = por %p85, %p86
      %s88 = ssub.s32 %s12, %s19
      %p89 = scmp.eq.s32.totalorder %s88, 0
      %s91 = sadd.s32 %s90, 1
      %s92 = scalar_select %p89, %s90, %s91
      %p95 = pneg %p89
      %p96 = scmp.eq.s32.totalorder %s12, 1
      %p97 = por %p95, %p96
      %p98 = scmp.ne.s32.totalorder %s90, %s93
      %p99 = scmp.eq.s32.totalorder %s12, 0
      %p100 = por %p98, %p99
      %p101 = scmp.ne.s32.totalorder %s90, %s93
      %p102 = scmp.eq.s32.totalorder %s17, 1
      %p103 = por %p101, %p102
      %p104 = scmp.ne.s32.totalorder %s93, %s94
      %p105 = scmp.eq.s32.totalorder %s17, 0
      %p106 = por %p104, %p105
      %p107 = scmp.ne.s32.totalorder %s93, %s94
      %p108 = scmp.eq.s32.totalorder %s18, 1
      %p109 = por %p107, %p108
      %p111 = scmp.ne.s32.totalorder %s94, %s110
      %p112 = scmp.eq.s32.totalorder %s18, 0
      %p113 = por %p111, %p112
      %p114 = scmp.le.s32.totalorder 1, %s12
      %p115 = scmp.lt.s32.totalorder %s12, 3
      %p116 = pnand %p114, %p115
      %p117 = pneg %p116
      // Predicated region
      $region9: #{direct_position_embedding_decoder.1} parent=5 // pred_check
        _
      $region10: #{direct_position_embedding_decoder.1} parent=5 // pred_check_branch
        %119 = sbr.rel (%p116) target = $region12
      $region11: #{direct_position_embedding_decoder.1} parent=5 // pred_region
        %s120 = ssub.s32 %s12, 1
        // Predicated region
        $region13: #{direct_position_embedding_decoder.1} parent=11 // pred_check
          %p121 = pneg %p59
        $region14: #{direct_position_embedding_decoder.1} parent=11 // pred_check_branch
          %123 = sbr.rel (%p121) target = $region16
        $region15: #{direct_position_embedding_decoder.1} parent=11 // pred_region
          _
        $region16: #{direct_position_embedding_decoder.1} parent=11 // pred_fallthru
          _
        // Predicated region
        $region17: #{direct_position_embedding_decoder.1} parent=11 // pred_check
          %p124 = pneg %p80
        $region18: #{direct_position_embedding_decoder.1} parent=11 // pred_check_branch
          %126 = sbr.rel (%p124) target = $region20
        $region19: #{direct_position_embedding_decoder.1} parent=11 // pred_region
          _
        $region20: #{direct_position_embedding_decoder.1} parent=11 // pred_fallthru
          _
      $region12: #{direct_position_embedding_decoder.1} parent=5 // pred_fallthru
        _
      %p127 = scmp.lt.s32.totalorder %s12, 2
      // Predicated region
      $region21: #{direct_position_embedding_decoder.1} parent=5 // pred_check
        %p128 = pneg %p127
      $region22: #{direct_position_embedding_decoder.1} parent=5 // pred_check_branch
        %130 = sbr.rel (%p128) target = $region24
      $region23: #{direct_position_embedding_decoder.1} parent=5 // pred_region
        // Predicated region
        $region25: #{direct_position_embedding_decoder.1} parent=23 // pred_check
          %p131 = pneg %p32
        $region26: #{direct_position_embedding_decoder.1} parent=23 // pred_check_branch
          %133 = sbr.rel (%p131) target = $region28
        $region27: #{direct_position_embedding_decoder.1} parent=23 // pred_region
          %p134 = scmp.lt.s32.totalorder %s12, 1
          %s135 = scalar_select %p134, %s12, 1
          %s136 = smul.addr %s135, 8
          %s137 = scalar_lea.vmem %s0, %s136
        $region28: #{direct_position_embedding_decoder.1} parent=23 // pred_fallthru
          _
      $region24: #{direct_position_embedding_decoder.1} parent=5 // pred_fallthru
        _
      %p138 = scmp.le.s32.totalorder 1, %s12
      %p139 = scmp.lt.s32.totalorder %s12, 3
      %p140 = pnand %p138, %p139
      %p141 = pneg %p140
      // Predicated region
      $region29: #{direct_position_embedding_decoder.1} parent=5 // pred_check
        _
      $region30: #{direct_position_embedding_decoder.1} parent=5 // pred_check_branch
        %143 = sbr.rel (%p140) target = $region32
      $region31: #{direct_position_embedding_decoder.1} parent=5 // pred_region
        %s144 = ssub.s32 %s12, 1
        %p145 = scmp.lt.s32.totalorder %s17, 1
        %s146 = scalar_select %p145, %s17, 1
        %s147 = smul.addr %s146, 8
        %s148 = scalar_lea.vmem %s0, %s147
        %p149 = pneg %p38
        %p150 = pneg %p35
        %p151 = pneg %p59
        %p152 = pneg %p56
        %p153 = pneg %p80
        %p154 = pneg %p77
        %p155 = pneg %p106
        %p156 = pneg %p103
        %s157 = sand.u32 %s93, 1
        %s158 = scalar_lea.sflag [#allocation3], %s157
        %s159 = sand.u32 %s93, 1
        %s160 = smul.addr %s159, 8
        %s161 = scalar_lea.vmem [#allocation2], %s160
        %p162 = scmp.lt.s32.totalorder %s17, 1
        %s163 = scalar_select %p162, %s17, 1
        %s164 = smul.addr %s163, 8
        %s165 = scalar_lea.vmem %s0, %s164
        %v166 = vld [vmem:[%s165] sm:$0xff]
        %v167 = vld [vmem:[%s1] sm:$0xff]
        %v168 = vld [vmem:[%s1 + $0x8] sm:$0xff]
        %v169 = vld [vmem:[%s1 + $0x10] sm:$0xff]
        %v170 = vld [vmem:[%s1 + $0x18] sm:$0xff]
        %v171 = vld [vmem:[%s1 + $0x20] sm:$0xff]
        %v172 = vld [vmem:[%s1 + $0x28] sm:$0xff]
        %v173 = vld [vmem:[%s1 + $0x30] sm:$0xff]
        %v174 = vld [vmem:[%s1 + $0x38] sm:$0xff]
        %v175 = vld [vmem:[%s2] sm:$0x1]
        %v177 = vlaneseq
        %v178 = vshrl.u32 %v177, 7
        %v179 = vsub.s32 0, %v178
        %v180 = vrot.slane %v175, %v179
        %vm182 = vcmask 523264
        %v184 = vsel %vm182, %v166, 0
        %186 = vmatprep.subr.mxu0 0.0
        %187 = vmatpush1.msra.mxu0 %v167
        %188 = vmatprep.subr.mxu0 0.0
        %189 = vmatpush1.msra.mxu0 %v168
        %190 = vmatprep.subr.mxu0 0.0
        %191 = vmatpush1.msra.mxu0 %v169
        %192 = vmatprep.subr.mxu0 0.0
        %193 = vmatpush1.msra.mxu0 %v170
        %194 = vmatprep.subr.mxu0 0.0
        %195 = vmatpush1.msra.mxu0 %v171
        %196 = vmatprep.subr.mxu0 0.0
        %197 = vmatpush1.msra.mxu0 %v172
        %198 = vmatprep.subr.mxu0 0.0
        %199 = vmatpush1.msra.mxu0 %v173
        %200 = vmatprep.subr.mxu0 0.0
        %201 = vmatpush1.msra.mxu0 %v174
        %202 = vmatprep.subr.mxu0 0.0
        %203 = vmatpush1.msra.mxu0 0.0
        %204 = vmatprep.subr.mxu0 0.0
        %205 = vmatpush1.msra.mxu0 0.0
        %206 = vmatprep.subr.mxu0 0.0
        %207 = vmatpush1.msra.mxu0 0.0
        %208 = vmatprep.subr.mxu0 0.0
        %209 = vmatpush1.msra.mxu0 0.0
        %210 = vmatprep.subr.mxu0 0.0
        %211 = vmatpush1.msra.mxu0 0.0
        %212 = vmatprep.subr.mxu0 0.0
        %213 = vmatpush1.msra.mxu0 0.0
        %214 = vmatprep.subr.mxu0 0.0
        %215 = vmatpush1.msra.mxu0 0.0
        %216 = vmatprep.subr.mxu0 0.0
        %217 = vmatpush1.msra.mxu0 0.0
        %218 = vmatprep.subr.mxu0 0.0
        %219 = vmatpush1.msra.mxu0 0.0
        %220 = vmatprep.subr.mxu0 0.0
        %221 = vmatpush1.msra.mxu0 0.0
        %222 = vmatprep.subr.mxu0 0.0
        %223 = vmatpush1.msra.mxu0 0.0
        %224 = vmatprep.subr.mxu0 0.0
        %225 = vmatpush1.msra.mxu0 0.0
        %226 = vmatprep.subr.mxu0 0.0
        %227 = vmatpush1.msra.mxu0 0.0
        %228 = vmatprep.subr.mxu0 0.0
        %229 = vmatpush1.msra.mxu0 0.0
        %230 = vmatprep.subr.mxu0 0.0
        %231 = vmatpush1.msra.mxu0 0.0
        %232 = vmatprep.subr.mxu0 0.0
        %233 = vmatpush1.msra.mxu0 0.0
        %234 = vmatprep.subr.mxu0 0.0
        %235 = vmatpush1.msra.mxu0 0.0
        %236 = vmatprep.subr.mxu0 0.0
        %237 = vmatpush1.msra.mxu0 0.0
        %238 = vmatprep.subr.mxu0 0.0
        %239 = vmatpush1.msra.mxu0 0.0
        %240 = vmatprep.subr.mxu0 0.0
        %241 = vmatpush1.msra.mxu0 0.0
        %242 = vmatprep.subr.mxu0 0.0
        %243 = vmatpush1.msra.mxu0 0.0
        %244 = vmatprep.subr.mxu0 0.0
        %245 = vmatpush1.msra.mxu0 0.0
        %246 = vmatprep.subr.mxu0 0.0
        %247 = vmatpush1.msra.mxu0 0.0
        %248 = vmatprep.subr.mxu0 0.0
        %249 = vmatpush1.msra.mxu0 0.0
        %250 = vmatprep.mubr.f32.mxu0 0.0
        %251 = vmatmul.mubr.f32.gmra.mrb[0].mxu0 %v184
        %v252 = vpop.f32.mrb[0].mxu0
        %v253 = vadd.f32 %v180, %v252
        %v254 = vpop.f32.mrb[0].mxu0
        %255 = vdwg.mxu0
        %v256 = vxor.u32 %v253, 2147483648
        %v257 = vmul.f32 %v256, 1.442695
        %v258 = vpow.pop %v257
        %v259 = vadd.f32 %v258, 1.0
        %v260 = vrcp.pop %v259
        %v261 = vmul.f32 1.0, %v260
        %vm262 = vcmask 261120
        %263 = vst.msk [vmem:[%s161] sm:$0xff] %vm262, %v261
        %s264 = sand.u32 %s93, 1
        %s265 = scalar_lea.sflag [#allocation3], %s264
        %s266 = sand.u32 %s93, 1
        %s267 = smul.addr %s266, 8
        %s268 = scalar_lea.vmem [#allocation2], %s267
        // Predicated region
        $region33: #{direct_position_embedding_decoder.1} parent=31 // pred_check
          %p269 = pneg %p103
        $region34: #{direct_position_embedding_decoder.1} parent=31 // pred_check_branch
          %271 = sbr.rel (%p269) target = $region36
        $region35: #{direct_position_embedding_decoder.1} parent=31 // pred_region
          %s273 = ssub.s32 128, 128
          %274 = vsyncadd %s265, %s273
          %s275 = smul.addr %s17, 128
          %s276 = scalar_lea.hbm %s3, %s275
          %s278 = sshll.u32 %s268, 4
          %s279 = int_to_ptr.vmem [resolvable:$true] %s278
          %281 = dma.vmem_to_hbm [thread:$0]  %s279, 128, %s276, %s265
        $region36: #{direct_position_embedding_decoder.1} parent=31 // pred_fallthru
          _
      $region32: #{direct_position_embedding_decoder.1} parent=5 // pred_fallthru
        _
      %p282 = scmp.le.s32.totalorder 2, %s12
      // Predicated region
      $region37: #{direct_position_embedding_decoder.1} parent=5 // pred_check
        %p283 = pneg %p282
      $region38: #{direct_position_embedding_decoder.1} parent=5 // pred_check_branch
        %285 = sbr.rel (%p283) target = $region40
      $region39: #{direct_position_embedding_decoder.1} parent=5 // pred_region
        %s286 = ssub.s32 %s12, 2
        // Predicated region
        $region41: #{direct_position_embedding_decoder.1} parent=39 // pred_check
          %p287 = pneg %p109
        $region42: #{direct_position_embedding_decoder.1} parent=39 // pred_check_branch
          %289 = sbr.rel (%p287) target = $region44
        $region43: #{direct_position_embedding_decoder.1} parent=39 // pred_region
          %s290 = sand.u32 %s94, 1
          %s291 = scalar_lea.sflag [#allocation3], %s290
          %s292 = sand.u32 %s94, 1
          %s293 = smul.addr %s292, 8
          %s294 = scalar_lea.vmem [#allocation2], %s293
          %295 = dma.done %s291, 128
        $region44: #{direct_position_embedding_decoder.1} parent=39 // pred_fallthru
          _
      $region40: #{direct_position_embedding_decoder.1} parent=5 // pred_fallthru
        _
    $region6: #{direct_position_embedding_decoder.1} parent=1 // loop_footer
      %s16 = sadd.s32 1, %s12
    $region7: #{direct_position_embedding_decoder.1} parent=1 // loop_footer_branch
      %11 = sbr.rel target = $region3
    $region8: #{direct_position_embedding_decoder.1} parent=1 // loop_exit
      _
    %296 = vsyncpa [#allocation3], 1
    %s297 = scalar_lea.sflag [#allocation3], 1
    %298 = vsyncpa %s297, 1

</llo_original>
